<compile_context>
chip_gen: v5e
topology: v5e:2x2
jax: 0.10.0
libtpu: 0.0.40
codegen_flags: <defaults>
</compile_context>

<pallas_src>
import jax
import jax.numpy as jnp
from jax.experimental import pallas as pl
from jax.experimental.pallas import tpu as pltpu


# ----------------------------------------------------------------------------
# Kernels
# ----------------------------------------------------------------------------
def _bmm_kernel_single_k(x_ref, w_ref, o_ref):
    """K fits in one tile: write the MXU result straight to the output tile."""
    o_ref[...] = jnp.dot(
        x_ref[...], w_ref[...], preferred_element_type=jnp.float32
    ).astype(o_ref.dtype)


def _bmm_kernel(x_ref, w_ref, o_ref, acc_ref):
    """Multi-K-step kernel with a resident f32 VMEM accumulator.

    x_ref: (tm, tk), w_ref: (tk, tn), o_ref: (tm, tn) -- batch dim squeezed.
    Relies on K being the LAST grid axis (output block resident across it).
    """
    k = pl.program_id(3)
    p = jnp.dot(x_ref[...], w_ref[...], preferred_element_type=jnp.float32)

    # First K step overwrites: saves one zero-fill store pass and one load
    # pass of the (tm, tn) f32 accumulator per output tile.
    @pl.when(k == 0)
    def _():
        acc_ref[...] = p

    @pl.when(k > 0)
    def _():
        acc_ref[...] += p

    # Downcast only after the full K reduction.
    @pl.when(k == pl.num_programs(3) - 1)
    def _():
        o_ref[...] = acc_ref[...].astype(o_ref.dtype)


# ----------------------------------------------------------------------------
# Tiling helpers
# ----------------------------------------------------------------------------
def _tile_and_pad(dim, preferred, align):
    """Return (tile, padded_dim).

    - dim <= preferred: full-extent block (always legal on TPU), no padding.
    - otherwise: largest `align`-multiple divisor of dim that is <= preferred.
    - no such divisor: use an aligned tile and pad dim up to a multiple of it
      (zero-padding; the caller slices the result back).  Never silently
      returns an over-sized full-extent tile or a sub-128 lane tile.
    """
    if dim <= preferred:
        return dim, dim
    t = max((preferred // align) * align, align)
    c = t
    while c >= align:
        if dim % c == 0:
            return c, dim
        c -= align
    padded = ((dim + t - 1) // t) * t
    return t, padded


def _vmem_physical_bytes():
    """Per-TensorCore VMEM capacity; conservative fallback if query fails."""
    try:
        info = pltpu.get_tpu_info()
        cap = getattr(info, "vmem_capacity_bytes", None)
        if cap:
            return int(cap)
    except Exception:
        pass
    return 64 * 1024 * 1024  # v7x per-TC VMEM (smallest of v5e/v6e/v7x)


# ----------------------------------------------------------------------------
# Wrapper
# ----------------------------------------------------------------------------
def bmm_pallas(x, w, *, tm=256, tn=512, tk=1024, compute_dtype=jnp.bfloat16):
    """Batched matmul via a tiled Pallas TPU kernel: out[b] = x[b] @ w[b].

    x: (B, M, K), w: (B, K, N) -> (B, M, N)

    compute_dtype: operand dtype fed to the MXU (default bf16 -> full MXU rate
    and half the HBM bytes).  Accumulation is always f32 and the output keeps
    x's original dtype.  Pass compute_dtype=None for exact-f32 operands.
    """
    B, M, K = x.shape
    Bw, Kw, N = w.shape
    assert (Bw, Kw) == (B, K), f"weight shape mismatch: {w.shape}"

    out_dtype = x.dtype
    if compute_dtype is not None:
        x = x.astype(compute_dtype)
        w = w.astype(compute_dtype)

    # Sublane tiles align to 16 (covers bf16 sublane packing and f32's 8);
    # lane tiles align to 128 (MXU width, unmasked vst).
    tm, Mp = _tile_and_pad(M, tm, 16)
    tn, Np = _tile_and_pad(N, tn, 128)
    tk, Kp = _tile_and_pad(K, tk, 128)

    # Zero-pad non-divisible dims (zero K-padding is mathematically exact;
    # padded M/N rows/cols are sliced away below).
    if (Mp, Kp) != (M, K):
        x = jnp.pad(x, ((0, 0), (0, Mp - M), (0, Kp - K)))
    if (Kp, Np) != (K, N):
        w = jnp.pad(w, ((0, 0), (0, Kp - K), (0, Np - N)))

    nm, nn, nk = Mp // tm, Np // tn, Kp // tk

    in_itemsize = jnp.dtype(x.dtype).itemsize
    out_itemsize = jnp.dtype(out_dtype).itemsize

    # Double-buffered x/w/out tiles + f32 accumulator scratch (rough bound).
    vmem_needed = (
        2 * (tm * tk + tk * tn) * in_itemsize
        + 2 * tm * tn * out_itemsize
        + tm * tn * 4
    )
    # Raise above the scoped default, keep headroom below physical VMEM
    # (queried per chip: 128 MiB on v5e/v6e, 64 MiB on v7x).
    vmem_cap = int(_vmem_physical_bytes() * 0.75)
    vmem_limit = min(max(int(vmem_needed * 2), 32 * 1024 * 1024), vmem_cap)

    # Actual HBM traffic including re-reads: x is re-read once per N tile,
    # w once per M tile.
    cost = pl.CostEstimate(
        flops=2 * B * Mp * Np * Kp,
        bytes_accessed=(B * Mp * Kp * nn + B * Kp * Np * nm) * in_itemsize
        + B * Mp * Np * out_itemsize,
        transcendentals=0,
    )

    common = dict(
        out_shape=jax.ShapeDtypeStruct((B, Mp, Np), out_dtype),
        cost_estimate=cost,
    )

    if nk == 1:
        # Single K step: no scratch accumulator, write output tiles directly.
        out = pl.pallas_call(
            _bmm_kernel_single_k,
            grid_spec=pltpu.PrefetchScalarGridSpec(
                num_scalar_prefetch=0,
                grid=(B, nm, nn),
                in_specs=[
                    pl.BlockSpec(
                        (pl.Squeezed(), tm, tk), lambda b, i, j: (b, i, 0)
                    ),
                    pl.BlockSpec(
                        (pl.Squeezed(), tk, tn), lambda b, i, j: (b, 0, j)
                    ),
                ],
                out_specs=pl.BlockSpec(
                    (pl.Squeezed(), tm, tn), lambda b, i, j: (b, i, j)
                ),
            ),
            compiler_params=pltpu.CompilerParams(
                dimension_semantics=("parallel", "parallel", "parallel"),
                vmem_limit_bytes=vmem_limit,
            ),
            **common,
        )(x, w)
    else:
        # K-innermost reduction over a resident f32 accumulator.
        # NOTE: if B * nm * nn < 2 on v7x (2 TensorCores), lower tm/tn so the
        # parallel axes split across both cores.
        out = pl.pallas_call(
            _bmm_kernel,
            grid_spec=pltpu.PrefetchScalarGridSpec(
                num_scalar_prefetch=0,
                grid=(B, nm, nn, nk),
                in_specs=[
                    pl.BlockSpec(
                        (pl.Squeezed(), tm, tk), lambda b, i, j, k: (b, i, k)
                    ),
                    pl.BlockSpec(
                        (pl.Squeezed(), tk, tn), lambda b, i, j, k: (b, k, j)
                    ),
                ],
                out_specs=pl.BlockSpec(
                    (pl.Squeezed(), tm, tn), lambda b, i, j, k: (b, i, j)
                ),
                scratch_shapes=[pltpu.VMEM((tm, tn), jnp.float32)],
            ),
            compiler_params=pltpu.CompilerParams(
                dimension_semantics=(
                    "parallel", "parallel", "parallel", "arbitrary"
                ),
                vmem_limit_bytes=vmem_limit,
            ),
            **common,
        )(x, w)

    if (Mp, Np) != (M, N):
        out = out[:, :M, :N]
    return out


class BMMPallas:
    """JAX/Pallas port of the PyTorch BMM expert test module."""

    def __init__(self, hidden_dim, batch_size, key, weight_dtype=jnp.bfloat16):
        self.hidden_dim = hidden_dim
        self.batch_size = batch_size
        # torch.randn equivalent: standard-normal init, deterministic via key.
        # Stored in bf16 by default to halve HBM weight traffic (pass
        # weight_dtype=jnp.float32 for exact torch.bmm-in-f32 numerics).
        self.weight1 = jax.random.normal(
            key, (batch_size, hidden_dim, hidden_dim), dtype=jnp.float32
        ).astype(weight_dtype)

    def __call__(self, x, **kwargs):
        return bmm_pallas(x, self.weight1, **kwargs)


if __name__ == "__main__":
    batch_size = 2
    seq = 8
    hidden_dim = 32

    key = jax.random.PRNGKey(0)
    k_w, k_x = jax.random.split(key)
    x = jax.random.normal(k_x, (batch_size, seq, hidden_dim), dtype=jnp.float32)

    # --- default (bf16-compute) path -------------------------------------
    model = BMMPallas(hidden_dim, batch_size, k_w)
    out = jax.block_until_ready(model(x))
    assert out.shape == (batch_size, seq, hidden_dim)
    assert out.dtype == x.dtype
    # Reference uses the same bf16-rounded operands with f32 accumulation, so
    # only reduction-order rounding differs.
    ref_bf = jnp.einsum(
        "bmh,bhk->bmk",
        x.astype(jnp.bfloat16).astype(jnp.float32),
        model.weight1.astype(jnp.float32),
    )
    assert jnp.allclose(out, ref_bf, atol=1e-2, rtol=1e-2)

    # --- exact-f32 path (torch.bmm-in-f32 semantics) ----------------------
    model_f32 = BMMPallas(hidden_dim, batch_size, k_w, weight_dtype=jnp.float32)
    out_f32 = jax.block_until_ready(model_f32(x, compute_dtype=None))
    ref_f32 = jnp.einsum("bmh,bhk->bmk", x, model_f32.weight1)
    assert jnp.allclose(out_f32, ref_f32, atol=1e-5, rtol=1e-5)

    # --- exercise the multi-K-step accumulator kernel ---------------------
    k_w2, k_x2 = jax.random.split(jax.random.PRNGKey(1))
    K2 = 256
    w2 = jax.random.normal(k_w2, (batch_size, K2, K2), dtype=jnp.float32)
    x2 = jax.random.normal(k_x2, (batch_size, seq, K2), dtype=jnp.float32)
    out2 = jax.block_until_ready(bmm_pallas(x2, w2, tk=128))  # K//tk == 2
    ref2 = jnp.einsum(
        "bmh,bhk->bmk",
        x2.astype(jnp.bfloat16).astype(jnp.float32),
        w2.astype(jnp.bfloat16).astype(jnp.float32),
    )
    assert jnp.allclose(out2, ref2, atol=1e-2, rtol=1e-2)

    print("KERNEL_OK")
</pallas_src>

<mosaic_0001>
module attributes {stable_mosaic.version = 11 : i64} {
  func.func @_bmm_kernel_single_k(%arg0: i32, %arg1: i32, %arg2: i32, %arg3: memref<1x8x32xbf16, #tpu.memory_space<vmem>>, %arg4: memref<1x32x32xbf16, #tpu.memory_space<vmem>>, %arg5: memref<1x8x32xf32, #tpu.memory_space<vmem>>) attributes {dimension_semantics = [#tpu.dimension_semantics<parallel>, #tpu.dimension_semantics<parallel>, #tpu.dimension_semantics<parallel>], iteration_bounds = array<i64: 2, 1, 1>, scalar_prefetch = 0 : i64, scratch_operands = 0 : i64, tpu.core_type = #tpu.core_type<tc>, window_params = [{transform_indices = @transform_0, window_bounds = array<i64: 1, 8, 32>}, {transform_indices = @transform_1, window_bounds = array<i64: 1, 32, 32>}, {transform_indices = @transform_2, window_bounds = array<i64: 1, 8, 32>}]} {
    %c0 = arith.constant 0 : index
    %c0_0 = arith.constant 0 : index
    %c0_1 = arith.constant 0 : index
    %0 = vector.load %arg3[%c0, %c0_0, %c0_1] : memref<1x8x32xbf16, #tpu.memory_space<vmem>>, vector<1x8x32xbf16>
    %1 = vector.shape_cast %0 : vector<1x8x32xbf16> to vector<8x32xbf16>
    %c0_2 = arith.constant 0 : index
    %c0_3 = arith.constant 0 : index
    %c0_4 = arith.constant 0 : index
    %2 = vector.load %arg4[%c0_2, %c0_3, %c0_4] : memref<1x32x32xbf16, #tpu.memory_space<vmem>>, vector<1x32x32xbf16>
    %3 = vector.shape_cast %2 : vector<1x32x32xbf16> to vector<32x32xbf16>
    %cst = arith.constant dense<0.000000e+00> : vector<8x32xf32>
    %4 = tpu.matmul %1, %3, %cst {dimension_numbers = #tpu.dot_dimension_numbers<[1], [0], [0], [1], [0, 0, 1, 1], [], []>} : vector<8x32xbf16>, vector<32x32xbf16>, vector<8x32xf32> -> vector<8x32xf32>
    %c0_5 = arith.constant 0 : index
    %c0_6 = arith.constant 0 : index
    %c0_7 = arith.constant 0 : index
    %5 = vector.load %arg5[%c0_5, %c0_6, %c0_7] : memref<1x8x32xf32, #tpu.memory_space<vmem>>, vector<1x8x32xf32>
    %6 = vector.shape_cast %5 : vector<1x8x32xf32> to vector<8x32xf32>
    %7 = vector.shape_cast %4 : vector<8x32xf32> to vector<1x8x32xf32>
    tpu.vector_store %arg5[%c0_5, %c0_6, %c0_7], %7 {strides = array<i32>} : memref<1x8x32xf32, #tpu.memory_space<vmem>>, vector<1x8x32xf32>,
    return
  }
  func.func @transform_0(%arg0: i32, %arg1: i32, %arg2: i32) -> (i32, i32, i32) {
    %c0_i32 = arith.constant 0 : i32
    %c0_i32_0 = arith.constant 0 : i32
    return %arg0, %arg1, %c0_i32 : i32, i32, i32
  }
  func.func @transform_1(%arg0: i32, %arg1: i32, %arg2: i32) -> (i32, i32, i32) {
    %c0_i32 = arith.constant 0 : i32
    %c0_i32_0 = arith.constant 0 : i32
    return %arg0, %c0_i32, %arg2 : i32, i32, i32
  }
  func.func @transform_2(%arg0: i32, %arg1: i32, %arg2: i32) -> (i32, i32, i32) {
    %c0_i32 = arith.constant 0 : i32
    return %arg0, %arg1, %arg2 : i32, i32, i32
  }
}

</mosaic_0001>

<llo_original>
// kernel: tpu_custom_call.1
$region0: #{tpu_custom_call.1}
  #allocation0 [shape = 'u32[]', space=smem, size = 0x4, offset = 0x4, fixed_abs, tag = 'smem constant byte address 0x4 - core index']
  #allocation1 [shape = 'u32[72,128]{1,0:T(1,128)}', space=vmem, size = 0x9000, scoped, tag = 'internal scratch']
  %s0 = inlined_call_operand.hbm [shape: bf16[2,8,32], index: 0, kind: input, shape index: {}]
  %s1 = inlined_call_operand.hbm [shape: bf16[2,32,32], index: 1, kind: input, shape index: {}]
  %s2 = inlined_call_operand.hbm [shape: f32[2,8,32], index: 2, kind: output, shape index: {}]
  %s3 = sld [smem:[#allocation0]]
  $region49: #{tpu_custom_call.1} parent=0
    _
  %s5 = ssub.s32 1, %s3
  %s6 = scalar_select 0, %s5, %s3
  $region1: #{tpu_custom_call.1} parent=0
    #allocation2 [shape = 'u8[4096]{0}', space=vmem, size = 0x1000, scoped, tag = 'input window, operand 0']
    #allocation3 [shape = 's32[2]{0}', space=sflag, size = 0x8, scoped, tag = 'scoped memory for tpu_custom_call.1']
    #allocation4 [shape = 's32[2]{0}', space=sflag, size = 0x8, scoped, tag = 'scoped memory for tpu_custom_call.1']
    #allocation5 [shape = 'u8[16384]{0}', space=vmem, size = 0x4000, scoped, tag = 'input window, operand 1']
    #allocation6 [shape = 's32[2]{0}', space=sflag, size = 0x8, scoped, tag = 'scoped memory for tpu_custom_call.1']
    #allocation7 [shape = 'u8[8192]{0}', space=vmem, size = 0x2000, scoped, tag = 'output window, operand 0']
    %7 = vsyncpa [#allocation3], 0
    %s8 = scalar_lea.sflag [#allocation3], 1
    %9 = vsyncpa %s8, 0
    %10 = vsyncpa [#allocation6], 0
    %s11 = scalar_lea.sflag [#allocation6], 1
    %12 = vsyncpa %s11, 0
    %13 = vsyncpa [#allocation4], 0
    %s14 = scalar_lea.sflag [#allocation4], 1
    %15 = vsyncpa %s14, 0
    loop: start=0, step=1, limit=4
    $region2: #{tpu_custom_call.1} parent=1 // loop_pre_header
      _
    $region3: #{tpu_custom_call.1} parent=1 // loop_header
      %s17 = sphi 0, %s21
      %p18 = scmp.ge.s32.totalorder %s17, 4
      %s24 = sphi 0, %s43
      %s25 = sphi 0, %s39
      %s26 = sphi 0, %s35
      %s27 = sphi 0, %s24
      %s28 = sphi 0, %s25
      %s29 = sphi 0, %s26
      %s30 = sphi 0, %s27
      %s31 = sphi 0, %s28
      %s32 = sphi 0, %s29
      %s48 = sphi 0, %s50
      %s51 = sphi 0, %s48
      %s52 = sphi 0, %s51
      %s68 = sphi 0, %s52
      %s76 = sphi 0, %s78
      %s79 = sphi 0, %s76
      %s80 = sphi 0, %s79
      %s96 = sphi 0, %s80
      %s106 = sphi 0, %s108
      %s109 = sphi 0, %s106
      %s110 = sphi 0, %s109
      %s126 = sphi 0, %s110
    $region4: #{tpu_custom_call.1} parent=1 // loop_header_branch
      %20 = sbr.rel (%p18) target = $region8
    $region5: #{tpu_custom_call.1} parent=1 // loop_body
      %s22 = ssub.s32 %s17, 1
      %s23 = ssub.s32 %s17, 2
      %s33 = sadd.s32 1, %s26
      %p34 = scmp.ge.s32.totalorder %s33, 1
      %s35 = scalar_select %p34, 0, %s33
      %s36 = sadd.s32 1, %s25
      %s37 = scalar_select %p34, %s36, %s25
      %p38 = scmp.ge.s32.totalorder %s37, 1
      %s39 = scalar_select %p38, 0, %s37
      %s40 = sadd.s32 1, %s24
      %s41 = scalar_select %p38, %s40, %s24
      %p42 = scmp.ge.s32.totalorder %s41, 2
      %s43 = scalar_select %p42, 0, %s41
      %s44 = ssub.s32 %s24, %s43
      %s45 = ssub.s32 %s25, %s39
      %s46 = sor.u32 %s44, %s45
      %p47 = scmp.eq.s32.totalorder %s46, 0
      %s49 = sadd.s32 %s48, 1
      %s50 = scalar_select %p47, %s48, %s49
      %p53 = pneg %p47
      %p54 = scmp.eq.s32.totalorder %s17, 1
      %p55 = por %p53, %p54
      %p56 = scmp.ne.s32.totalorder %s48, %s51
      %p57 = scmp.eq.s32.totalorder %s17, 0
      %p58 = por %p56, %p57
      %p59 = scmp.ne.s32.totalorder %s48, %s51
      %p60 = scmp.eq.s32.totalorder %s22, 1
      %p61 = por %p59, %p60
      %p62 = scmp.ne.s32.totalorder %s51, %s52
      %p63 = scmp.eq.s32.totalorder %s22, 0
      %p64 = por %p62, %p63
      %p65 = scmp.ne.s32.totalorder %s51, %s52
      %p66 = scmp.eq.s32.totalorder %s23, 1
      %p67 = por %p65, %p66
      %p69 = scmp.ne.s32.totalorder %s52, %s68
      %p70 = scmp.eq.s32.totalorder %s23, 0
      %p71 = por %p69, %p70
      %s72 = ssub.s32 %s24, %s43
      %s73 = ssub.s32 %s26, %s35
      %s74 = sor.u32 %s72, %s73
      %p75 = scmp.eq.s32.totalorder %s74, 0
      %s77 = sadd.s32 %s76, 1
      %s78 = scalar_select %p75, %s76, %s77
      %p81 = pneg %p75
      %p82 = scmp.eq.s32.totalorder %s17, 1
      %p83 = por %p81, %p82
      %p84 = scmp.ne.s32.totalorder %s76, %s79
      %p85 = scmp.eq.s32.totalorder %s17, 0
      %p86 = por %p84, %p85
      %p87 = scmp.ne.s32.totalorder %s76, %s79
      %p88 = scmp.eq.s32.totalorder %s22, 1
      %p89 = por %p87, %p88
      %p90 = scmp.ne.s32.totalorder %s79, %s80
      %p91 = scmp.eq.s32.totalorder %s22, 0
      %p92 = por %p90, %p91
      %p93 = scmp.ne.s32.totalorder %s79, %s80
      %p94 = scmp.eq.s32.totalorder %s23, 1
      %p95 = por %p93, %p94
      %p97 = scmp.ne.s32.totalorder %s80, %s96
      %p98 = scmp.eq.s32.totalorder %s23, 0
      %p99 = por %p97, %p98
      %s100 = ssub.s32 %s24, %s43
      %s101 = ssub.s32 %s25, %s39
      %s102 = sor.u32 %s100, %s101
      %s103 = ssub.s32 %s26, %s35
      %s104 = sor.u32 %s102, %s103
      %p105 = scmp.eq.s32.totalorder %s104, 0
      %s107 = sadd.s32 %s106, 1
      %s108 = scalar_select %p105, %s106, %s107
      %p111 = pneg %p105
      %p112 = scmp.eq.s32.totalorder %s17, 1
      %p113 = por %p111, %p112
      %p114 = scmp.ne.s32.totalorder %s106, %s109
      %p115 = scmp.eq.s32.totalorder %s17, 0
      %p116 = por %p114, %p115
      %p117 = scmp.ne.s32.totalorder %s106, %s109
      %p118 = scmp.eq.s32.totalorder %s22, 1
      %p119 = por %p117, %p118
      %p120 = scmp.ne.s32.totalorder %s109, %s110
      %p121 = scmp.eq.s32.totalorder %s22, 0
      %p122 = por %p120, %p121
      %p123 = scmp.ne.s32.totalorder %s109, %s110
      %p124 = scmp.eq.s32.totalorder %s23, 1
      %p125 = por %p123, %p124
      %p127 = scmp.ne.s32.totalorder %s110, %s126
      %p128 = scmp.eq.s32.totalorder %s23, 0
      %p129 = por %p127, %p128
      %p130 = scmp.le.s32.totalorder 1, %s17
      %p131 = scmp.lt.s32.totalorder %s17, 3
      %p132 = pnand %p130, %p131
      %p133 = pneg %p132
      // Predicated region
      $region9: #{tpu_custom_call.1} parent=5 // pred_check
        _
      $region10: #{tpu_custom_call.1} parent=5 // pred_check_branch
        %135 = sbr.rel (%p132) target = $region12
      $region11: #{tpu_custom_call.1} parent=5 // pred_region
        %s136 = ssub.s32 %s17, 1
      $region12: #{tpu_custom_call.1} parent=5 // pred_fallthru
        _
      %p137 = scmp.lt.s32.totalorder %s17, 2
      // Predicated region
      $region13: #{tpu_custom_call.1} parent=5 // pred_check
        %p138 = pneg %p137
      $region14: #{tpu_custom_call.1} parent=5 // pred_check_branch
        %140 = sbr.rel (%p138) target = $region16
      $region15: #{tpu_custom_call.1} parent=5 // pred_region
        // Predicated region
        $region17: #{tpu_custom_call.1} parent=15 // pred_check
          %p141 = pneg %p58
        $region18: #{tpu_custom_call.1} parent=15 // pred_check_branch
          %143 = sbr.rel (%p141) target = $region20
        $region19: #{tpu_custom_call.1} parent=15 // pred_region
          %s144 = sand.u32 %s48, 1
          %s145 = scalar_lea.sflag [#allocation3], %s144
          %s146 = sand.u32 %s48, 1
          %s147 = smul.addr %s146, 4
          %s148 = scalar_lea.vmem [#allocation2], %s147
          %150 = vsyncadd %s145, 0
          %s151 = sadd.s32 %s25, %s24
          %s152 = smul.addr %s151, 4
          %s153 = scalar_lea.hbm %s0, %s152
          %s155 = sshll.u32 %s153, 4
          %s156 = int_to_ptr.hbm [resolvable:$true] %s155
          %s157 = sshll.u32 %s148, 4
          %s158 = int_to_ptr.vmem [resolvable:$true] %s157
          %160 = dma.hbm_to_vmem [thread:$0]  %s156, 64, %s158, %s145
        $region20: #{tpu_custom_call.1} parent=15 // pred_fallthru
          _
        // Predicated region
        $region21: #{tpu_custom_call.1} parent=15 // pred_check
          %p161 = pneg %p86
        $region22: #{tpu_custom_call.1} parent=15 // pred_check_branch
          %163 = sbr.rel (%p161) target = $region24
        $region23: #{tpu_custom_call.1} parent=15 // pred_region
          %s164 = sand.u32 %s76, 1
          %s165 = scalar_lea.sflag [#allocation6], %s164
          %s166 = sand.u32 %s76, 1
          %s167 = smul.addr %s166, 16
          %s168 = scalar_lea.vmem [#allocation5], %s167
          %170 = vsyncadd %s165, 0
          %s171 = smul.addr %s24, 4
          %s172 = sadd.s32 %s26, %s171
          %s173 = smul.addr %s172, 4
          %s174 = scalar_lea.hbm %s1, %s173
          %s175 = sshll.u32 %s174, 4
          %s176 = int_to_ptr.hbm [resolvable:$true] %s175
          %s177 = sshll.u32 %s168, 4
          %s178 = int_to_ptr.vmem [resolvable:$true] %s177
          %183 = dma.hbm_to_vmem [thread:$0]  %s176, 256, %s178, %s165, 64, 64, 4
        $region24: #{tpu_custom_call.1} parent=15 // pred_fallthru
          _
      $region16: #{tpu_custom_call.1} parent=5 // pred_fallthru
        _
      %p184 = scmp.le.s32.totalorder 1, %s17
      %p185 = scmp.lt.s32.totalorder %s17, 3
      %p186 = pnand %p184, %p185
      %p187 = pneg %p186
      // Predicated region
      $region25: #{tpu_custom_call.1} parent=5 // pred_check
        _
      $region26: #{tpu_custom_call.1} parent=5 // pred_check_branch
        %189 = sbr.rel (%p186) target = $region28
      $region27: #{tpu_custom_call.1} parent=5 // pred_region
        %s190 = ssub.s32 %s17, 1
        %s191 = sand.u32 %s51, 1
        %s192 = scalar_lea.sflag [#allocation3], %s191
        %s193 = sand.u32 %s51, 1
        %s194 = smul.addr %s193, 4
        %s195 = scalar_lea.vmem [#allocation2], %s194
        // Predicated region
        $region29: #{tpu_custom_call.1} parent=27 // pred_check
          %p196 = pneg %p64
        $region30: #{tpu_custom_call.1} parent=27 // pred_check_branch
          %198 = sbr.rel (%p196) target = $region32
        $region31: #{tpu_custom_call.1} parent=27 // pred_region
          %200 = dma.done %s192, 64
        $region32: #{tpu_custom_call.1} parent=27 // pred_fallthru
          _
        %s201 = sand.u32 %s79, 1
        %s202 = scalar_lea.sflag [#allocation6], %s201
        %s203 = sand.u32 %s79, 1
        %s204 = smul.addr %s203, 16
        %s205 = scalar_lea.vmem [#allocation5], %s204
        // Predicated region
        $region33: #{tpu_custom_call.1} parent=27 // pred_check
          %p206 = pneg %p92
        $region34: #{tpu_custom_call.1} parent=27 // pred_check_branch
          %208 = sbr.rel (%p206) target = $region36
        $region35: #{tpu_custom_call.1} parent=27 // pred_region
          %210 = dma.done %s202, 256
        $region36: #{tpu_custom_call.1} parent=27 // pred_fallthru
          _
        %s211 = sand.u32 %s51, 1
        %s212 = scalar_lea.sflag [#allocation3], %s211
        %s213 = sand.u32 %s51, 1
        %s214 = smul.addr %s213, 4
        %s215 = scalar_lea.vmem [#allocation2], %s214
        %p216 = pneg %p64
        %p217 = pneg %p61
        %s218 = sand.u32 %s79, 1
        %s219 = scalar_lea.sflag [#allocation6], %s218
        %s220 = sand.u32 %s79, 1
        %s221 = smul.addr %s220, 16
        %s222 = scalar_lea.vmem [#allocation5], %s221
        %p223 = pneg %p92
        %p224 = pneg %p89
        %p225 = pneg %p122
        %p226 = pneg %p119
        %s227 = sand.u32 %s109, 1
        %s228 = scalar_lea.sflag [#allocation4], %s227
        %s229 = sand.u32 %s109, 1
        %s230 = smul.addr %s229, 8
        %s231 = scalar_lea.vmem [#allocation7], %s230
        %v233 = vld [vmem:[%s195] sm:$0xf]
        %v234 = vld [vmem:[%s205] sm:$0xf]
        %v235 = vld [vmem:[%s205 + $0x4] sm:$0xf]
        %v236 = vld [vmem:[%s205 + $0x8] sm:$0xf]
        %v237 = vld [vmem:[%s205 + $0xc] sm:$0xf]
        %v242 = vunpack.c.l.b16 %v234
        %v243 = vunpack.c.l.b16 %v235
        %v244 = vunpack.c.l.b16 %v236
        %v245 = vunpack.c.l.b16 %v237
        %v246 = vpack.c.b16 %v243, %v242
        %v247 = vpack.c.b16 %v245, %v244
        %vm250 = vcmask 261120
        %v252 = vsel %vm250, %v233, 0
        %254 = vmatpush.bf16.msra.mxu0 0
        %255 = vmatpush.bf16.msra.mxu0 0
        %256 = vmatpush.bf16.msra.mxu0 0
        %257 = vmatpush.bf16.msra.mxu0 0
        %258 = vmatpush.bf16.msra.mxu0 0
        %259 = vmatpush.bf16.msra.mxu0 0
        %260 = vmatpush.bf16.msra.mxu0 %v247
        %261 = vmatpush.bf16.msra.mxu0 %v246
        %262 = vmatmul.bf16.gmra.mxu0 %v252
        %v263 = vpop.f32.mrf.mxu0
        %v264 = vadd.f32 0.0, %v263
        %v265 = vpop.f32.mrf.mxu0
        %266 = vdwg.mxu0
        %267 = vst.msk [vmem:[%s231] sm:$0xff] %vm250, %v264
        %s268 = sand.u32 %s109, 1
        %s269 = scalar_lea.sflag [#allocation4], %s268
        %s270 = sand.u32 %s109, 1
        %s271 = smul.addr %s270, 8
        %s272 = scalar_lea.vmem [#allocation7], %s271
        // Predicated region
        $region37: #{tpu_custom_call.1} parent=27 // pred_check
          %p273 = pneg %p119
        $region38: #{tpu_custom_call.1} parent=27 // pred_check_branch
          %275 = sbr.rel (%p273) target = $region40
        $region39: #{tpu_custom_call.1} parent=27 // pred_region
          %277 = vsyncadd %s269, 0
          %s278 = sadd.s32 %s29, %s28
          %s279 = sadd.s32 %s278, %s27
          %s280 = smul.addr %s279, 8
          %s281 = scalar_lea.hbm %s2, %s280
          %s283 = sshll.u32 %s272, 4
          %s284 = int_to_ptr.vmem [resolvable:$true] %s283
          %s285 = sshll.u32 %s281, 4
          %s286 = int_to_ptr.hbm [resolvable:$true] %s285
          %288 = dma.vmem_to_hbm [thread:$0]  %s284, 128, %s286, %s269
        $region40: #{tpu_custom_call.1} parent=27 // pred_fallthru
          _
      $region28: #{tpu_custom_call.1} parent=5 // pred_fallthru
        _
      %p289 = scmp.le.s32.totalorder 2, %s17
      // Predicated region
      $region41: #{tpu_custom_call.1} parent=5 // pred_check
        %p290 = pneg %p289
      $region42: #{tpu_custom_call.1} parent=5 // pred_check_branch
        %292 = sbr.rel (%p290) target = $region44
      $region43: #{tpu_custom_call.1} parent=5 // pred_region
        %s293 = ssub.s32 %s17, 2
        // Predicated region
        $region45: #{tpu_custom_call.1} parent=43 // pred_check
          %p294 = pneg %p125
        $region46: #{tpu_custom_call.1} parent=43 // pred_check_branch
          %296 = sbr.rel (%p294) target = $region48
        $region47: #{tpu_custom_call.1} parent=43 // pred_region
          %s297 = sand.u32 %s110, 1
          %s298 = scalar_lea.sflag [#allocation4], %s297
          %s299 = sand.u32 %s110, 1
          %s300 = smul.addr %s299, 8
          %s301 = scalar_lea.vmem [#allocation7], %s300
          %303 = dma.done %s298, 128
        $region48: #{tpu_custom_call.1} parent=43 // pred_fallthru
          _
      $region44: #{tpu_custom_call.1} parent=5 // pred_fallthru
        _
    $region6: #{tpu_custom_call.1} parent=1 // loop_footer
      %s21 = sadd.s32 1, %s17
    $region7: #{tpu_custom_call.1} parent=1 // loop_footer_branch
      %16 = sbr.rel target = $region3
    $region8: #{tpu_custom_call.1} parent=1 // loop_exit
      _
    %304 = vsyncpa [#allocation3], 1
    %s305 = scalar_lea.sflag [#allocation3], 1
    %306 = vsyncpa %s305, 1
    %307 = vsyncpa [#allocation6], 1
    %s308 = scalar_lea.sflag [#allocation6], 1
    %309 = vsyncpa %s308, 1
    %310 = vsyncpa [#allocation4], 1
    %s311 = scalar_lea.sflag [#allocation4], 1
    %312 = vsyncpa %s311, 1

</llo_original>
